<compile_context>
chip_gen: v7x
topology: tpu7x:2x2x1
jax: 0.10.0
libtpu: 0.0.40
codegen_flags: <defaults>
</compile_context>

<pallas_src>
import jax
import jax.numpy as jnp
from jax.experimental import pallas as pl


def _round_up(x, m):
    return ((x + m - 1) // m) * m


def _make_kernel(B, S, A, out_cols):
    def kernel(in_ref, out_ref):
        slab = in_ref[...]                        # (ROWS, COLS) f32, one load
        # ---- static in-vreg slices of the packed input slab (free) --------
        st       = slab[:B, :S]                   # (B, S)  state
        beyond   = slab[:B, S:S + 1]              # (B, 1)  beyond_done 0/1
        info_st  = slab[:B, S + 1:2 * S + 1]      # (B, S)  info['state']
        a_t      = slab[B:B + A, :B]              # (A, B)  action, transposed
        lb_a_col = slab[B:B + A, B:B + 1]         # (A, 1)
        hb_a_col = slab[B:B + A, B + 1:B + 2]     # (A, 1)
        lb_s_row = slab[B + A:B + A + 1, :S]      # (1, S)
        hb_s_row = slab[B + A + 1:B + A + 2, :S]  # (1, S)

        # TODO(synk): warnings.warn() on out-of-bounds inputs is a host-side
        # side effect with no in-kernel equivalent; only the numeric branch
        # is kept.

        # "action out of action space!" branch.  Single fused reduction; the
        # clip is the identity when in bounds, so it is applied
        # unconditionally -- only the info['state'] swap needs the reduction.
        # NOTE: whole-batch `.all()` gate, exactly as in the torch code.
        action_ok = jnp.all((a_t >= lb_a_col) & (a_t <= hb_a_col))
        a_t = jnp.minimum(jnp.maximum(a_t, lb_a_col), hb_a_col)
        st = jnp.where(action_ok, st, info_st)

        # "state out of state space!" branch: unconditional clip == gated clip.
        st = jnp.minimum(jnp.maximum(st, lb_s_row), hb_s_row)

        # (1 + action.sum(-1)) * state with torch trailing-dim broadcast:
        # column j of `state` is scaled by (1 + sum_k action[j, k])  (B == S).
        # Sublane reduce over the transposed action -> pure VPU/XLU, exact f32.
        scale = 1.0 + jnp.sum(a_t, axis=0, keepdims=True)            # (1, B)
        state_next = scale * st                                       # (B, S)
        reward = jnp.sum(state_next - st, axis=-1, keepdims=True)     # (B, 1)

        # isdone is all-False in the template, so mask == beyond_done; only
        # the freeze / reward-zeroing is needed in-kernel.
        done = beyond != 0.0                                          # (B, 1)
        state_next = jnp.where(done, st, state_next)
        reward = jnp.where(done, 0.0, reward)

        # Single lane-dense UNMASKED store of the whole output tile.
        out_ref[...] = jnp.concatenate(
            [state_next, reward,
             jnp.zeros((B, out_cols - S - 1), jnp.float32)], axis=1)

    return kernel


@jax.jit
def _forward_impl(state, action, info_state, beyond, lb_s, hb_s, lb_a, hb_a):
    B, S = state.shape
    A = action.shape[1]
    # Required by the template's (1 + action.sum(-1)) * state broadcast.
    assert B == S, "template's broadcast requires batch_size == state_dim"

    ROWS = _round_up(B + A + 2, 8)
    COLS = _round_up(max(2 * S + 1, B + 2), 128)
    OUT_COLS = _round_up(S + 1, 128)

    # TODO(synk): if the caller hands bf16 state/action, pack the slab in bf16
    # and upcast in-kernel to halve input DMA bytes; demo inputs are f32.
    f32 = jnp.float32
    state = state.astype(f32)
    action = action.astype(f32)
    info_state = info_state.astype(f32)
    beyond_f = beyond.astype(f32)
    lb_s = lb_s.astype(f32).reshape(S)
    hb_s = hb_s.astype(f32).reshape(S)
    lb_a = lb_a.astype(f32).reshape(A)
    hb_a = hb_a.astype(f32).reshape(A)

    # ---- one lane-dense packed input slab (1 DMA instead of 4/8) ----------
    #   rows 0..B-1   : [ state | beyond | info_state | pad ]
    #   rows B..B+A-1 : [ action.T | lb_action | hb_action | pad ]
    #   row  B+A      : [ lb_state | pad ]
    #   row  B+A+1    : [ hb_state | pad ]
    # (pure layout plumbing; fused with the kernel under this jit)
    row_state = jnp.concatenate([state, beyond_f[:, None], info_state], axis=1)
    row_state = jnp.pad(row_state, ((0, 0), (0, COLS - row_state.shape[1])))
    row_act = jnp.concatenate([action.T, lb_a[:, None], hb_a[:, None]], axis=1)
    row_act = jnp.pad(row_act, ((0, 0), (0, COLS - row_act.shape[1])))
    row_bnd = jnp.pad(jnp.stack([lb_s, hb_s], axis=0), ((0, 0), (0, COLS - S)))
    slab = jnp.concatenate([row_state, row_act, row_bnd], axis=0)
    slab = jnp.pad(slab, ((0, ROWS - slab.shape[0]), (0, 0)))

    # Gridless pallas_call: one full-array VMEM block per operand, no
    # double-buffering / pipeline bookkeeping for this single-step kernel.
    # TODO(synk): for production batch sizes add a leading "parallel" batch
    # grid axis with (tb, S) row tiles (tb % 8 == 0) so v7x's 2nd TensorCore
    # is used, and re-derive tb against v7x's ~32 MiB scoped / 64 MiB VMEM.
    out = pl.pallas_call(
        _make_kernel(B, S, A, OUT_COLS),
        out_shape=jax.ShapeDtypeStruct((B, OUT_COLS), jnp.float32),
    )(slab)

    state_next = out[:, :S]
    reward = out[:, S]
    return state_next, reward


def gym_democonti_forward(state, action, info, beyond_done=None, *,
                          lb_state, hb_state, lb_action, hb_action):
    """Pallas implementation of GymDemocontiModel.forward."""
    state = jnp.asarray(state)
    action = jnp.asarray(action)
    B = state.shape[0]
    if beyond_done is None:
        beyond_done = jnp.zeros((B,), dtype=jnp.bool_)
    beyond_done = jnp.asarray(beyond_done).astype(jnp.bool_)

    state_next, reward = _forward_impl(
        state, action, jnp.asarray(info["state"]), beyond_done,
        jnp.asarray(lb_state), jnp.asarray(hb_state),
        jnp.asarray(lb_action), jnp.asarray(hb_action))

    mask = beyond_done                     # isdone | beyond_done, isdone=False
    info_out = {"state": state_next, "constraint": 0}
    return state_next, reward, mask, info_out


def _ref_forward(state, action, info_state, beyond, lb_s, hb_s, lb_a, hb_a):
    """Pure-JAX reference mirroring the torch forward (for validation)."""
    action_ok = jnp.all(action <= hb_a) & jnp.all(action >= lb_a)
    action = jnp.where(action_ok, action, jnp.clip(action, lb_a, hb_a))
    state = jnp.where(action_ok, state, info_state)
    state_ok = jnp.all(state <= hb_s) & jnp.all(state >= lb_s)
    state = jnp.where(state_ok, state, jnp.clip(state, lb_s, hb_s))
    state_next = (1.0 + action.sum(-1)) * state   # torch-style broadcast, B==S
    reward = (state_next - state).sum(-1)
    mask = beyond                                 # isdone is all-False
    state_next = jnp.where(mask[:, None], state, state_next)
    reward = jnp.where(beyond, 0.0, reward)
    return state_next, reward, mask


if __name__ == "__main__":
    key = jax.random.PRNGKey(0)
    B, S, A = 8, 8, 4   # batch == state_dim (see broadcast note above)

    k1, k2, k3 = jax.random.split(key, 3)
    state = jax.random.uniform(k1, (B, S), jnp.float32, -2.0, 2.0)
    # Some actions intentionally outside [-1, 1] to exercise the clip branch.
    action = jax.random.uniform(k2, (B, A), jnp.float32, -1.5, 1.5)
    # Distinct info['state'] so the swap branch is actually observable.
    info_state = state + jax.random.uniform(k3, (B, S), jnp.float32, -0.1, 0.1)

    # Deterministic "parameters" (the module's bound tensors).
    lb_state = jnp.full((S,), -10.0, jnp.float32)
    hb_state = jnp.full((S,), 10.0, jnp.float32)
    lb_action = jnp.full((A,), -1.0, jnp.float32)
    hb_action = jnp.full((A,), 1.0, jnp.float32)

    info = {"state": info_state}
    beyond_done = (jnp.arange(B) % 3 == 0)

    state_next, reward, mask, info_out = gym_democonti_forward(
        state, action, info, beyond_done,
        lb_state=lb_state, hb_state=hb_state,
        lb_action=lb_action, hb_action=hb_action)
    jax.block_until_ready((state_next, reward, mask))

    ref_next, ref_rew, ref_mask = _ref_forward(
        state, action, info_state, beyond_done,
        lb_state, hb_state, lb_action, hb_action)

    assert state_next.shape == (B, S) and state_next.dtype == jnp.float32
    assert reward.shape == (B,) and mask.shape == (B,) and mask.dtype == jnp.bool_
    assert jnp.allclose(state_next, ref_next, atol=1e-5, rtol=1e-5)
    assert jnp.allclose(reward, ref_rew, atol=1e-5, rtol=1e-5)
    assert jnp.array_equal(mask, ref_mask)
    assert info_out["constraint"] == 0
    print("KERNEL_OK")
</pallas_src>

<mosaic_0001>
module attributes {stable_mosaic.version = 11 : i64} {
  func.func @kernel(%arg0: memref<16x128xf32, #tpu.memory_space<vmem>>, %arg1: memref<8x128xf32, #tpu.memory_space<vmem>>) attributes {dimension_semantics = [], scalar_prefetch = 0 : i64, scratch_operands = 0 : i64, tpu.core_type = #tpu.core_type<tc>} {
    %c0 = arith.constant 0 : index
    %c0_0 = arith.constant 0 : index
    %0 = vector.load %arg0[%c0, %c0_0] : memref<16x128xf32, #tpu.memory_space<vmem>>, vector<16x128xf32>
    %1 = vector.extract_strided_slice %0 {offsets = [0, 0], sizes = [8, 8], strides = [1, 1]} : vector<16x128xf32> to vector<8x8xf32>
    %2 = vector.extract_strided_slice %0 {offsets = [0, 8], sizes = [8, 1], strides = [1, 1]} : vector<16x128xf32> to vector<8x1xf32>
    %3 = vector.extract_strided_slice %0 {offsets = [0, 9], sizes = [8, 8], strides = [1, 1]} : vector<16x128xf32> to vector<8x8xf32>
    %4 = vector.extract_strided_slice %0 {offsets = [8, 0], sizes = [4, 8], strides = [1, 1]} : vector<16x128xf32> to vector<4x8xf32>
    %5 = vector.extract_strided_slice %0 {offsets = [8, 8], sizes = [4, 1], strides = [1, 1]} : vector<16x128xf32> to vector<4x1xf32>
    %6 = vector.extract_strided_slice %0 {offsets = [8, 9], sizes = [4, 1], strides = [1, 1]} : vector<16x128xf32> to vector<4x1xf32>
    %7 = vector.extract_strided_slice %0 {offsets = [12, 0], sizes = [1, 8], strides = [1, 1]} : vector<16x128xf32> to vector<1x8xf32>
    %8 = vector.extract_strided_slice %0 {offsets = [13, 0], sizes = [1, 8], strides = [1, 1]} : vector<16x128xf32> to vector<1x8xf32>
    %9 = vector.broadcast %5 : vector<4x1xf32> to vector<4x8xf32>
    %10 = arith.cmpf oge, %4, %9 : vector<4x8xf32>
    %11 = vector.broadcast %6 : vector<4x1xf32> to vector<4x8xf32>
    %12 = arith.cmpf ole, %4, %11 : vector<4x8xf32>
    %13 = arith.andi %10, %12 : vector<4x8xi1>
    %cst = arith.constant 1.000000e+00 : f32
    %cst_1 = arith.constant 0.000000e+00 : f32
    %14 = vector.broadcast %cst : f32 to vector<4x8xf32>
    %15 = vector.broadcast %cst_1 : f32 to vector<4x8xf32>
    %16 = arith.select %13, %14, %15 : vector<4x8xi1>, vector<4x8xf32>
    %17 = vector.shape_cast %16 : vector<4x8xf32> to vector<1x4x8xf32>
    %cst_2 = arith.constant dense<0x7F800000> : vector<1xf32>
    %18 = vector.multi_reduction <minimumf>, %17, %cst_2 [1, 2] : vector<1x4x8xf32> to vector<1xf32>
    %19 = vector.shape_cast %18 : vector<1xf32> to vector<1x1x1xf32>
    %20 = vector.extract %19[0, 0, 0] : f32 from vector<1x1x1xf32>
    %cst_3 = arith.constant 0.000000e+00 : f32
    %21 = arith.cmpf ogt, %20, %cst_3 : f32
    %22 = vector.broadcast %5 : vector<4x1xf32> to vector<4x8xf32>
    %23 = arith.maximumf %4, %22 : vector<4x8xf32>
    %24 = vector.broadcast %6 : vector<4x1xf32> to vector<4x8xf32>
    %25 = arith.minimumf %23, %24 : vector<4x8xf32>
    %26 = arith.select %21, %1, %3 : vector<8x8xf32>
    %27 = vector.broadcast %7 : vector<1x8xf32> to vector<8x8xf32>
    %28 = arith.maximumf %26, %27 : vector<8x8xf32>
    %29 = vector.broadcast %8 : vector<1x8xf32> to vector<8x8xf32>
    %30 = arith.minimumf %28, %29 : vector<8x8xf32>
    %cst_4 = arith.constant dense<0.000000e+00> : vector<8xf32>
    %31 = vector.multi_reduction <add>, %25, %cst_4 [0] : vector<4x8xf32> to vector<8xf32>
    %32 = vector.shape_cast %31 : vector<8xf32> to vector<1x8xf32>
    %cst_5 = arith.constant 1.000000e+00 : f32
    %33 = vector.broadcast %cst_5 : f32 to vector<1x8xf32>
    %34 = arith.addf %33, %32 : vector<1x8xf32>
    %35 = vector.broadcast %34 : vector<1x8xf32> to vector<8x8xf32>
    %36 = arith.mulf %35, %30 : vector<8x8xf32>
    %37 = arith.subf %36, %30 : vector<8x8xf32>
    %cst_6 = arith.constant dense<0.000000e+00> : vector<8xf32>
    %38 = vector.multi_reduction <add>, %37, %cst_6 [1] : vector<8x8xf32> to vector<8xf32>
    %39 = vector.shape_cast %38 : vector<8xf32> to vector<8x1xf32>
    %cst_7 = arith.constant 0.000000e+00 : f32
    %40 = vector.broadcast %cst_7 : f32 to vector<8x1xf32>
    %41 = arith.cmpf one, %2, %40 : vector<8x1xf32>
    %42 = vector.shape_cast %41 : vector<8x1xi1> to vector<8x1xi1>
    %43 = vector.broadcast %42 : vector<8x1xi1> to vector<8x8xi1>
    %44 = arith.select %43, %30, %36 : vector<8x8xi1>, vector<8x8xf32>
    %cst_8 = arith.constant 0.000000e+00 : f32
    %45 = vector.broadcast %cst_8 : f32 to vector<8x1xf32>
    %46 = arith.select %41, %45, %39 : vector<8x1xi1>, vector<8x1xf32>
    %cst_9 = arith.constant 0.000000e+00 : f32
    %47 = vector.broadcast %cst_9 : f32 to vector<8x119xf32>
    %48 = tpu.concatenate %44, %46, %47 in 1 : vector<8x8xf32>, vector<8x1xf32>, vector<8x119xf32> -> vector<8x128xf32>
    %c0_10 = arith.constant 0 : index
    %c0_11 = arith.constant 0 : index
    %49 = vector.load %arg1[%c0_10, %c0_11] : memref<8x128xf32, #tpu.memory_space<vmem>>, vector<8x128xf32>
    tpu.vector_store %arg1[%c0_10, %c0_11], %48 {strides = array<i32>} : memref<8x128xf32, #tpu.memory_space<vmem>>, vector<8x128xf32>,
    return
  }
}

</mosaic_0001>

<llo_original>
// kernel: _forward_impl.1
$region0: #{_forward_impl.1}
  #allocation0 [shape = 'u32[]', space=smem, size = 0x4, offset = 0x4, fixed_abs, tag = 'smem constant byte address 0x4 - core index']
  #allocation1 [shape = 'u32[144,128]{1,0:T(1,128)}', space=vmem, size = 0x12000, scoped, tag = 'internal scratch']
  %s0 = inlined_call_operand.vmem [shape: f32[16,128], index: 0, kind: input, shape index: {}]
  %s1 = inlined_call_operand.vmem [shape: f32[8,128], index: 1, kind: output, shape index: {}]
  %s2 = sld [smem:[#allocation0]]
  $region14: #{_forward_impl.1} parent=0
    _
  %s4 = ssub.s32 1, %s2
  %s5 = scalar_select 0, %s4, %s2
  // Predicated region
  $region2: #{_forward_impl.1} parent=0 // pred_check
    _
  $region3: #{_forward_impl.1} parent=0 // pred_check_branch
    %7 = sbr.rel (0) target = $region5
  $region4: #{_forward_impl.1} parent=0 // pred_region
    _
  $region5: #{_forward_impl.1} parent=0 // pred_fallthru
    _
  %v8 = vld [vmem:[%s0] sm:$0xff]
  %v9 = vld [vmem:[%s0 + $0x8] sm:$0xff]
  %11 = vset.pattern.permute.xlu0 8
  %12 = vperm.xlu0 %11, %v9
  %v13 = vpop.permute.xlu0 %12
  %vm15 = vcmp.ge.f32.partialorder %v9, %v13
  %16 = vset.pattern.permute.xlu0 9
  %17 = vperm.xlu0 %16, %v9
  %v18 = vpop.permute.xlu0 %17
  %vm20 = vcmp.le.f32.partialorder %v9, %v18
  %vm21 = vmand %vm15, %vm20
  %v22 = vsel %vm21, 1.0, 0.0
  %vm23 = vcmask 60416
  %v24 = vsel %vm23, %v22, inf
  %25 = vmin.xlane.f32.xlu0 %v24
  %v26 = vpop.xlane.xlu0 %25
  %v27 = vrot.slane %v26, 4
  %v28 = vmin.f32 %v26, %v27
  %v29 = vrot.slane %v28, 2
  %v30 = vmin.f32 %v28, %v29
  %v31 = vrot.slane %v30, 1
  %v32 = vmin.f32 %v30, %v31
  %s33 = vtos %v32
  %p34 = scmp.gt.f32.partialorder %s33, 0.0
  %v35 = vmax.f32 %v9, %v13
  %v36 = vmin.f32 %v35, %v18
  %s37 = scalar_select %p34, 1, 0
  %v38 = vstv %s37
  %vm39 = vcmp.eq.s32.totalorder %v38, 1
  %41 = vrot.lane.b32.xlu0 %v8, 119
  %v42 = vpop.permute.xlu0 %41
  %v44 = vsel %vm39, %v8, %v42
  %v45 = vlaneseq
  %v46 = vshrl.u32 %v45, 7
  %v47 = vsub.s32 4, %v46
  %v48 = vrot.slane %v9, %v47
  %v49 = vmax.f32 %v44, %v48
  %v50 = vlaneseq
  %v51 = vshrl.u32 %v50, 7
  %v52 = vsub.s32 5, %v51
  %v53 = vrot.slane %v9, %v52
  %v54 = vmin.f32 %v49, %v53
  %v55 = vsel %vm23, %v36, 0.0
  %v56 = vrot.slane %v55, 4
  %v57 = vadd.f32 %v55, %v56
  %v58 = vrot.slane %v57, 2
  %v59 = vadd.f32 %v57, %v58
  %v60 = vrot.slane %v59, 1
  %v61 = vadd.f32 %v59, %v60
  %v62 = vadd.f32 %v61, 1.0
  %v63 = vmul.f32 %v62, %v54
  %v64 = vsub.f32 %v63, %v54
  %vm65 = vcmask 64512
  %v66 = vsel %vm65, %v64, 0.0
  %67 = vadd.xlane.f32.xlu0 %v66
  %v68 = vpop.xlane.xlu0 %67
  %vm69 = vcmp.ne.f32.partialorder %v8, 0.0
  %v70 = vsel %vm69, 1, 0
  %71 = vset.pattern.permute.xlu0 8
  %72 = vperm.xlu0 %71, %v70
  %v73 = vpop.permute.xlu0 %72
  %vm74 = vcmp.eq.s32.totalorder %v73, 1
  %v75 = vsel %vm74, %v54, %v63
  %v76 = vsel %vm69, 0.0, %v68
  %v77 = vsel %vm65, %v75, %v76
  %vm78 = vcmask 72704
  %v79 = vsel %vm78, %v77, 0.0
  %80 = vst [vmem:[%s1] sm:$0xff] %v79
  // Predicated region
  $region6: #{_forward_impl.1} parent=0 // pred_check
    _
  $region7: #{_forward_impl.1} parent=0 // pred_check_branch
    %82 = sbr.rel (0) target = $region9
  $region8: #{_forward_impl.1} parent=0 // pred_region
    _
  $region9: #{_forward_impl.1} parent=0 // pred_fallthru
    _
  // Predicated region
  $region10: #{_forward_impl.1} parent=0 // pred_check
    _
  $region11: #{_forward_impl.1} parent=0 // pred_check_branch
    %84 = sbr.rel (0) target = $region13
  $region12: #{_forward_impl.1} parent=0 // pred_region
    _
  $region13: #{_forward_impl.1} parent=0 // pred_fallthru
    _

</llo_original>
